<compile_context>
chip_gen: v6e
topology: v6e:2x2x1
jax: 0.10.0
libtpu: 0.0.40
codegen_flags: <defaults>
</compile_context>

<pallas_src>
import jax
import jax.numpy as jnp
from jax.experimental import pallas as pl
from jax.experimental.pallas import tpu as pltpu


# Default batch tile (lane axis).  Multiple of 128; in the feature-major layout the
# per-tile VMEM footprint is tiny (x block ~16*TM*4 B, h1 ~128*TM*4 B), so 4096
# comfortably fits v5e/v6e (16/32 MiB scoped) and v7x (32 MiB scoped / 64 MiB phys).
_DEFAULT_TM = 4096


def _mlp_kernel(x_ref, w1_ref, b1_ref, w2_ref, b2_ref, w3_ref, b3_ref, o_ref):
    # One (10, TM) feature-major batch tile; all three matmuls + ReLUs fused,
    # batch on the lane axis, f32 accumulation.
    xT = x_ref[...]                                                       # (10, TM)
    h1 = jnp.dot(w1_ref[...], xT, preferred_element_type=jnp.float32) + b1_ref[...]
    h1 = jnp.maximum(h1, 0.0)                                             # (128, TM)
    h2 = jnp.dot(w2_ref[...], h1, preferred_element_type=jnp.float32) + b2_ref[...]
    h2 = jnp.maximum(h2, 0.0)                                             # (64, TM)
    y = jnp.dot(w3_ref[...], h2, preferred_element_type=jnp.float32) + b3_ref[...]
    o_ref[...] = y.astype(o_ref.dtype)                                    # (3, TM)


def _round_up(n, m):
    return ((n + m - 1) // m) * m


def collision_response_net(x, params, *, tm=_DEFAULT_TM):
    """x: (B, 10) float32; params: PyTorch-layout weights/biases. Returns (B, 3) f32."""
    w1, b1, w2, b2, w3, b3 = (
        params["w1"], params["b1"], params["w2"], params["b2"], params["w3"], params["b3"]
    )
    B = x.shape[0]

    # Tile size on the lane (batch) axis: multiple of 128 so the (10, TM) / (3, TM)
    # blocks satisfy the lane rule; never larger than the 128-rounded batch.
    tm = max(128, (tm // 128) * 128)
    TM = min(tm, _round_up(B, 128))
    B_pad = _round_up(B, TM)

    # Feature-major input: (10, B_pad).  The pad is folded into the transpose copy
    # the layout change requires anyway (single fused XLA copy, no extra HBM pass).
    if B_pad != B:
        xT = jnp.pad(x, ((0, B_pad - B), (0, 0))).T
    else:
        xT = x.T

    grid = (B_pad // TM,)

    # Weights/biases: full-array blocks, constant index_map -> resident across grid.
    resident = lambda shape: pl.BlockSpec(shape, lambda i: (0, 0))

    weight_bytes = sum(int(a.size) * a.dtype.itemsize for a in (w1, b1, w2, b2, w3, b3))
    cost = pl.CostEstimate(
        flops=2 * B_pad * (10 * 128 + 128 * 64 + 64 * 3),
        transcendentals=0,
        bytes_accessed=B_pad * (10 + 3) * 4 + weight_bytes,
    )

    out_t = pl.pallas_call(
        _mlp_kernel,
        out_shape=jax.ShapeDtypeStruct((3, B_pad), jnp.float32),
        grid=grid,
        in_specs=[
            pl.BlockSpec((10, TM), lambda i: (0, i)),   # xT: streamed per tile, lane-dense
            resident((128, 10)),                        # W1 (out, in)
            resident((128, 1)),                         # b1 (out, 1) -> lane broadcast
            resident((64, 128)),                        # W2
            resident((64, 1)),                          # b2
            resident((3, 64)),                          # W3
            resident((3, 1)),                           # b3
        ],
        out_specs=pl.BlockSpec((3, TM), lambda i: (0, i)),   # lane-dense output tile
        compiler_params=pltpu.CompilerParams(
            dimension_semantics=("parallel",),          # v7x: shard batch tiles across 2 TCs
        ),
        cost_estimate=cost,
    )(xT, w1, b1, w2, b2, w3, b3)

    # Back to the module's (B, 3) layout; drop padded batch columns.
    out_t = out_t[:, :B] if B_pad != B else out_t
    return out_t.T


def init_params(key):
    """Deterministic PyTorch-Linear-style init: U(-1/sqrt(fan_in), 1/sqrt(fan_in)).

    Weights stored in PyTorch (out_features, in_features) layout; biases as (out, 1)
    so they broadcast along the lane (batch) axis inside the kernel.
    """
    def linear_init(k, fan_in, fan_out):
        kw, kb = jax.random.split(k)
        bound = 1.0 / jnp.sqrt(fan_in)
        w = jax.random.uniform(kw, (fan_out, fan_in), jnp.float32, -bound, bound)
        b = jax.random.uniform(kb, (fan_out, 1), jnp.float32, -bound, bound)
        return w, b

    k1, k2, k3 = jax.random.split(key, 3)
    w1, b1 = linear_init(k1, 10, 128)
    w2, b2 = linear_init(k2, 128, 64)
    w3, b3 = linear_init(k3, 64, 3)
    return {"w1": w1, "b1": b1, "w2": w2, "b2": b2, "w3": w3, "b3": b3}


def _reference(x, p):
    h1 = jnp.maximum(x @ p["w1"].T + p["b1"][:, 0], 0.0)
    h2 = jnp.maximum(h1 @ p["w2"].T + p["b2"][:, 0], 0.0)
    return h2 @ p["w3"].T + p["b3"][:, 0]


if __name__ == "__main__":
    key = jax.random.PRNGKey(0)
    k_params, k_x = jax.random.split(key)
    params = init_params(k_params)

    # Small shape consistent with the module (batch of 10-feature state vectors).
    B = 8
    x = jax.random.normal(k_x, (B, 10), dtype=jnp.float32)

    out = collision_response_net(x, params)
    out = jax.block_until_ready(out)
    ref = _reference(x, params)
    assert out.shape == (B, 3)
    assert jnp.allclose(out, ref, atol=1e-5, rtol=1e-5)

    # Exercise the tiled/pipelined path: batch larger than one tile and not a
    # multiple of the tile size (remainder folded into the transpose-pad copy).
    B2 = 3000
    x2 = jax.random.normal(jax.random.PRNGKey(7), (B2, 10), dtype=jnp.float32)
    out2 = jax.block_until_ready(collision_response_net(x2, params, tm=1024))
    ref2 = _reference(x2, params)
    assert out2.shape == (B2, 3)
    assert jnp.allclose(out2, ref2, atol=1e-4, rtol=1e-4)

    print("KERNEL_OK")
</pallas_src>

<mosaic_0001>
module attributes {stable_mosaic.version = 11 : i64} {
  func.func @_mlp_kernel(%arg0: i32, %arg1: memref<10x128xf32, #tpu.memory_space<vmem>>, %arg2: memref<128x10xf32, #tpu.memory_space<vmem>>, %arg3: memref<128x1xf32, #tpu.memory_space<vmem>>, %arg4: memref<64x128xf32, #tpu.memory_space<vmem>>, %arg5: memref<64x1xf32, #tpu.memory_space<vmem>>, %arg6: memref<3x64xf32, #tpu.memory_space<vmem>>, %arg7: memref<3x1xf32, #tpu.memory_space<vmem>>, %arg8: memref<3x128xf32, #tpu.memory_space<vmem>>) attributes {dimension_semantics = [#tpu.dimension_semantics<parallel>], iteration_bounds = array<i64: 1>, scalar_prefetch = 0 : i64, scratch_operands = 0 : i64, tpu.core_type = #tpu.core_type<tc>, window_params = [{transform_indices = @transform_0, window_bounds = array<i64: 10, 128>}, {pipeline_mode = #tpu.pipeline_mode<synchronous>, transform_indices = @transform_1, window_bounds = array<i64: 128, 10>}, {pipeline_mode = #tpu.pipeline_mode<synchronous>, transform_indices = @transform_2, window_bounds = array<i64: 128, 1>}, {pipeline_mode = #tpu.pipeline_mode<synchronous>, transform_indices = @transform_3, window_bounds = array<i64: 64, 128>}, {pipeline_mode = #tpu.pipeline_mode<synchronous>, transform_indices = @transform_4, window_bounds = array<i64: 64, 1>}, {pipeline_mode = #tpu.pipeline_mode<synchronous>, transform_indices = @transform_5, window_bounds = array<i64: 3, 64>}, {pipeline_mode = #tpu.pipeline_mode<synchronous>, transform_indices = @transform_6, window_bounds = array<i64: 3, 1>}, {transform_indices = @transform_7, window_bounds = array<i64: 3, 128>}]} {
    %c0 = arith.constant 0 : index
    %c0_0 = arith.constant 0 : index
    %0 = vector.load %arg1[%c0, %c0_0] : memref<10x128xf32, #tpu.memory_space<vmem>>, vector<10x128xf32>
    %c0_1 = arith.constant 0 : index
    %c0_2 = arith.constant 0 : index
    %1 = vector.load %arg2[%c0_1, %c0_2] : memref<128x10xf32, #tpu.memory_space<vmem>>, vector<128x10xf32>
    %cst = arith.constant dense<0.000000e+00> : vector<128x128xf32>
    %2 = tpu.matmul %1, %0, %cst {dimension_numbers = #tpu.dot_dimension_numbers<[1], [0], [0], [1], [0, 0, 1, 1], [], []>} : vector<128x10xf32>, vector<10x128xf32>, vector<128x128xf32> -> vector<128x128xf32>
    %c0_3 = arith.constant 0 : index
    %c0_4 = arith.constant 0 : index
    %3 = vector.load %arg3[%c0_3, %c0_4] : memref<128x1xf32, #tpu.memory_space<vmem>>, vector<128x1xf32>
    %4 = vector.broadcast %3 : vector<128x1xf32> to vector<128x128xf32>
    %5 = arith.addf %2, %4 : vector<128x128xf32>
    %cst_5 = arith.constant 0.000000e+00 : f32
    %6 = vector.broadcast %cst_5 : f32 to vector<128x128xf32>
    %7 = arith.maximumf %5, %6 : vector<128x128xf32>
    %c0_6 = arith.constant 0 : index
    %c0_7 = arith.constant 0 : index
    %8 = vector.load %arg4[%c0_6, %c0_7] : memref<64x128xf32, #tpu.memory_space<vmem>>, vector<64x128xf32>
    %cst_8 = arith.constant dense<0.000000e+00> : vector<64x128xf32>
    %9 = tpu.matmul %8, %7, %cst_8 {dimension_numbers = #tpu.dot_dimension_numbers<[1], [0], [0], [1], [0, 0, 1, 1], [], []>} : vector<64x128xf32>, vector<128x128xf32>, vector<64x128xf32> -> vector<64x128xf32>
    %c0_9 = arith.constant 0 : index
    %c0_10 = arith.constant 0 : index
    %10 = vector.load %arg5[%c0_9, %c0_10] : memref<64x1xf32, #tpu.memory_space<vmem>>, vector<64x1xf32>
    %11 = vector.broadcast %10 : vector<64x1xf32> to vector<64x128xf32>
    %12 = arith.addf %9, %11 : vector<64x128xf32>
    %cst_11 = arith.constant 0.000000e+00 : f32
    %13 = vector.broadcast %cst_11 : f32 to vector<64x128xf32>
    %14 = arith.maximumf %12, %13 : vector<64x128xf32>
    %c0_12 = arith.constant 0 : index
    %c0_13 = arith.constant 0 : index
    %15 = vector.load %arg6[%c0_12, %c0_13] : memref<3x64xf32, #tpu.memory_space<vmem>>, vector<3x64xf32>
    %cst_14 = arith.constant dense<0.000000e+00> : vector<3x128xf32>
    %16 = tpu.matmul %15, %14, %cst_14 {dimension_numbers = #tpu.dot_dimension_numbers<[1], [0], [0], [1], [0, 0, 1, 1], [], []>} : vector<3x64xf32>, vector<64x128xf32>, vector<3x128xf32> -> vector<3x128xf32>
    %c0_15 = arith.constant 0 : index
    %c0_16 = arith.constant 0 : index
    %17 = vector.load %arg7[%c0_15, %c0_16] : memref<3x1xf32, #tpu.memory_space<vmem>>, vector<3x1xf32>
    %18 = vector.broadcast %17 : vector<3x1xf32> to vector<3x128xf32>
    %19 = arith.addf %16, %18 : vector<3x128xf32>
    %c0_17 = arith.constant 0 : index
    %c0_18 = arith.constant 0 : index
    %20 = vector.load %arg8[%c0_17, %c0_18] : memref<3x128xf32, #tpu.memory_space<vmem>>, vector<3x128xf32>
    tpu.vector_store %arg8[%c0_17, %c0_18], %19 {strides = array<i32>} : memref<3x128xf32, #tpu.memory_space<vmem>>, vector<3x128xf32>,
    return
  }
  func.func @transform_0(%arg0: i32) -> (i32, i32) {
    %c0_i32 = arith.constant 0 : i32
    %c0_i32_0 = arith.constant 0 : i32
    return %c0_i32, %arg0 : i32, i32
  }
  func.func @transform_1(%arg0: i32) -> (i32, i32) {
    %c0_i32 = arith.constant 0 : i32
    %c0_i32_0 = arith.constant 0 : i32
    %c0_i32_1 = arith.constant 0 : i32
    return %c0_i32, %c0_i32_0 : i32, i32
  }
  func.func @transform_2(%arg0: i32) -> (i32, i32) {
    %c0_i32 = arith.constant 0 : i32
    %c0_i32_0 = arith.constant 0 : i32
    %c0_i32_1 = arith.constant 0 : i32
    return %c0_i32, %c0_i32_0 : i32, i32
  }
  func.func @transform_3(%arg0: i32) -> (i32, i32) {
    %c0_i32 = arith.constant 0 : i32
    %c0_i32_0 = arith.constant 0 : i32
    %c0_i32_1 = arith.constant 0 : i32
    return %c0_i32, %c0_i32_0 : i32, i32
  }
  func.func @transform_4(%arg0: i32) -> (i32, i32) {
    %c0_i32 = arith.constant 0 : i32
    %c0_i32_0 = arith.constant 0 : i32
    %c0_i32_1 = arith.constant 0 : i32
    return %c0_i32, %c0_i32_0 : i32, i32
  }
  func.func @transform_5(%arg0: i32) -> (i32, i32) {
    %c0_i32 = arith.constant 0 : i32
    %c0_i32_0 = arith.constant 0 : i32
    %c0_i32_1 = arith.constant 0 : i32
    return %c0_i32, %c0_i32_0 : i32, i32
  }
  func.func @transform_6(%arg0: i32) -> (i32, i32) {
    %c0_i32 = arith.constant 0 : i32
    %c0_i32_0 = arith.constant 0 : i32
    %c0_i32_1 = arith.constant 0 : i32
    return %c0_i32, %c0_i32_0 : i32, i32
  }
  func.func @transform_7(%arg0: i32) -> (i32, i32) {
    %c0_i32 = arith.constant 0 : i32
    %c0_i32_0 = arith.constant 0 : i32
    return %c0_i32, %arg0 : i32, i32
  }
}

</mosaic_0001>

<llo_original>
// kernel: tpu_custom_call.1
$region0: #{tpu_custom_call.1}
  #allocation0 [shape = 'u32[]', space=smem, size = 0x4, offset = 0x4, fixed_abs, tag = 'smem constant byte address 0x4 - core index']
  #allocation1 [shape = 'u32[144,128]{1,0:T(1,128)}', space=vmem, size = 0x12000, scoped, tag = 'internal scratch']
  %s0 = inlined_call_operand.vmem [shape: f32[10,128], index: 0, kind: input, shape index: {}]
  %s1 = inlined_call_operand.vmem [shape: f32[128,10], index: 1, kind: input, shape index: {}]
  %s2 = inlined_call_operand.vmem [shape: f32[128,1], index: 2, kind: input, shape index: {}]
  %s3 = inlined_call_operand.vmem [shape: f32[64,128], index: 3, kind: input, shape index: {}]
  %s4 = inlined_call_operand.vmem [shape: f32[64,1], index: 4, kind: input, shape index: {}]
  %s5 = inlined_call_operand.vmem [shape: f32[3,64], index: 5, kind: input, shape index: {}]
  %s6 = inlined_call_operand.vmem [shape: f32[3,1], index: 6, kind: input, shape index: {}]
  %s7 = inlined_call_operand.hbm [shape: f32[3,128], index: 7, kind: output, shape index: {}]
  %s8 = sld [smem:[#allocation0]]
  $region38: #{tpu_custom_call.1} parent=0
    _
  %s10 = ssub.s32 1, %s8
  %s11 = scalar_select 0, %s10, %s8
  $region1: #{tpu_custom_call.1} parent=0
    #allocation2 [shape = 'u8[2048]{0}', space=vmem, size = 0x800, scoped, tag = 'output window, operand 0, single buffered']
    #allocation3 [shape = 's32[1]{0}', space=sflag, size = 0x4, scoped, tag = 'scoped memory for tpu_custom_call.1']
    %12 = vsyncpa [#allocation3], 0
    // Predicated region
    $region2: #{tpu_custom_call.1} parent=1 // pred_check
      _
    $region3: #{tpu_custom_call.1} parent=1 // pred_check_branch
      %14 = sbr.rel (0) target = $region5
    $region4: #{tpu_custom_call.1} parent=1 // pred_region
      _
    $region5: #{tpu_custom_call.1} parent=1 // pred_fallthru
      _
    // Predicated region
    $region6: #{tpu_custom_call.1} parent=1 // pred_check
      _
    $region7: #{tpu_custom_call.1} parent=1 // pred_check_branch
      %16 = sbr.rel (0) target = $region9
    $region8: #{tpu_custom_call.1} parent=1 // pred_region
      _
    $region9: #{tpu_custom_call.1} parent=1 // pred_fallthru
      _
    // Predicated region
    $region10: #{tpu_custom_call.1} parent=1 // pred_check
      _
    $region11: #{tpu_custom_call.1} parent=1 // pred_check_branch
      %18 = sbr.rel (0) target = $region13
    $region12: #{tpu_custom_call.1} parent=1 // pred_region
      _
    $region13: #{tpu_custom_call.1} parent=1 // pred_fallthru
      _
    // Predicated region
    $region14: #{tpu_custom_call.1} parent=1 // pred_check
      _
    $region15: #{tpu_custom_call.1} parent=1 // pred_check_branch
      %20 = sbr.rel (0) target = $region17
    $region16: #{tpu_custom_call.1} parent=1 // pred_region
      _
    $region17: #{tpu_custom_call.1} parent=1 // pred_fallthru
      _
    // Predicated region
    $region18: #{tpu_custom_call.1} parent=1 // pred_check
      _
    $region19: #{tpu_custom_call.1} parent=1 // pred_check_branch
      %22 = sbr.rel (0) target = $region21
    $region20: #{tpu_custom_call.1} parent=1 // pred_region
      _
    $region21: #{tpu_custom_call.1} parent=1 // pred_fallthru
      _
    // Predicated region
    $region22: #{tpu_custom_call.1} parent=1 // pred_check
      _
    $region23: #{tpu_custom_call.1} parent=1 // pred_check_branch
      %24 = sbr.rel (0) target = $region25
    $region24: #{tpu_custom_call.1} parent=1 // pred_region
      _
    $region25: #{tpu_custom_call.1} parent=1 // pred_fallthru
      _
    // Predicated region
    $region26: #{tpu_custom_call.1} parent=1 // pred_check
      _
    $region27: #{tpu_custom_call.1} parent=1 // pred_check_branch
      %26 = sbr.rel (0) target = $region29
    $region28: #{tpu_custom_call.1} parent=1 // pred_region
      _
    $region29: #{tpu_custom_call.1} parent=1 // pred_fallthru
      _
    %v27 = vld [vmem:[%s0] sm:$0xff]
    %v28 = vld [vmem:[%s0 + $0x8] sm:$0x3]
    %v29 = vld [vmem:[%s1] sm:$0xff]
    %v30 = vld [vmem:[%s1 + $0x8] sm:$0xff]
    %v31 = vld [vmem:[%s1 + $0x10] sm:$0xff]
    %v32 = vld [vmem:[%s1 + $0x18] sm:$0xff]
    %v33 = vld [vmem:[%s1 + $0x20] sm:$0xff]
    %v34 = vld [vmem:[%s1 + $0x28] sm:$0xff]
    %v35 = vld [vmem:[%s1 + $0x30] sm:$0xff]
    %v36 = vld [vmem:[%s1 + $0x38] sm:$0xff]
    %v37 = vld [vmem:[%s1 + $0x40] sm:$0xff]
    %v38 = vld [vmem:[%s1 + $0x48] sm:$0xff]
    %v39 = vld [vmem:[%s1 + $0x50] sm:$0xff]
    %v40 = vld [vmem:[%s1 + $0x58] sm:$0xff]
    %v41 = vld [vmem:[%s1 + $0x60] sm:$0xff]
    %v42 = vld [vmem:[%s1 + $0x68] sm:$0xff]
    %v43 = vld [vmem:[%s1 + $0x70] sm:$0xff]
    %v44 = vld [vmem:[%s1 + $0x78] sm:$0xff]
    %v45 = vld [vmem:[%s2] sm:$0xff]
    %v46 = vld [vmem:[%s2 + $0x8] sm:$0xff]
    %v47 = vld [vmem:[%s2 + $0x10] sm:$0xff]
    %v48 = vld [vmem:[%s2 + $0x18] sm:$0xff]
    %v49 = vld [vmem:[%s2 + $0x20] sm:$0xff]
    %v50 = vld [vmem:[%s2 + $0x28] sm:$0xff]
    %v51 = vld [vmem:[%s2 + $0x30] sm:$0xff]
    %v52 = vld [vmem:[%s2 + $0x38] sm:$0xff]
    %v53 = vld [vmem:[%s2 + $0x40] sm:$0xff]
    %v54 = vld [vmem:[%s2 + $0x48] sm:$0xff]
    %v55 = vld [vmem:[%s2 + $0x50] sm:$0xff]
    %v56 = vld [vmem:[%s2 + $0x58] sm:$0xff]
    %v57 = vld [vmem:[%s2 + $0x60] sm:$0xff]
    %v58 = vld [vmem:[%s2 + $0x68] sm:$0xff]
    %v59 = vld [vmem:[%s2 + $0x70] sm:$0xff]
    %v60 = vld [vmem:[%s2 + $0x78] sm:$0xff]
    %62 = vset.pattern.permute.xlu0 0
    %63 = vperm.xlu0 %62, %v45
    %v64 = vpop.permute.xlu0 %63
    %67 = vset.pattern.permute.xlu0 0
    %68 = vperm.xlu0 %67, %v46
    %v69 = vpop.permute.xlu0 %68
    %72 = vset.pattern.permute.xlu0 0
    %73 = vperm.xlu0 %72, %v47
    %v74 = vpop.permute.xlu0 %73
    %77 = vset.pattern.permute.xlu0 0
    %78 = vperm.xlu0 %77, %v48
    %v79 = vpop.permute.xlu0 %78
    %82 = vset.pattern.permute.xlu0 0
    %83 = vperm.xlu0 %82, %v49
    %v84 = vpop.permute.xlu0 %83
    %87 = vset.pattern.permute.xlu0 0
    %88 = vperm.xlu0 %87, %v50
    %v89 = vpop.permute.xlu0 %88
    %92 = vset.pattern.permute.xlu0 0
    %93 = vperm.xlu0 %92, %v51
    %v94 = vpop.permute.xlu0 %93
    %97 = vset.pattern.permute.xlu0 0
    %98 = vperm.xlu0 %97, %v52
    %v99 = vpop.permute.xlu0 %98
    %102 = vset.pattern.permute.xlu0 0
    %103 = vperm.xlu0 %102, %v53
    %v104 = vpop.permute.xlu0 %103
    %107 = vset.pattern.permute.xlu0 0
    %108 = vperm.xlu0 %107, %v54
    %v109 = vpop.permute.xlu0 %108
    %112 = vset.pattern.permute.xlu0 0
    %113 = vperm.xlu0 %112, %v55
    %v114 = vpop.permute.xlu0 %113
    %117 = vset.pattern.permute.xlu0 0
    %118 = vperm.xlu0 %117, %v56
    %v119 = vpop.permute.xlu0 %118
    %122 = vset.pattern.permute.xlu0 0
    %123 = vperm.xlu0 %122, %v57
    %v124 = vpop.permute.xlu0 %123
    %127 = vset.pattern.permute.xlu0 0
    %128 = vperm.xlu0 %127, %v58
    %v129 = vpop.permute.xlu0 %128
    %132 = vset.pattern.permute.xlu0 0
    %133 = vperm.xlu0 %132, %v59
    %v134 = vpop.permute.xlu0 %133
    %137 = vset.pattern.permute.xlu0 0
    %138 = vperm.xlu0 %137, %v60
    %v139 = vpop.permute.xlu0 %138
    %vm141 = vcmask 80896
    %v143 = vsel %vm141, %v29, 0
    %v146 = vsel %vm141, %v30, 0
    %v149 = vsel %vm141, %v31, 0
    %v152 = vsel %vm141, %v32, 0
    %v155 = vsel %vm141, %v33, 0
    %v158 = vsel %vm141, %v34, 0
    %v161 = vsel %vm141, %v35, 0
    %v164 = vsel %vm141, %v36, 0
    %v167 = vsel %vm141, %v37, 0
    %v170 = vsel %vm141, %v38, 0
    %v173 = vsel %vm141, %v39, 0
    %v176 = vsel %vm141, %v40, 0
    %v179 = vsel %vm141, %v41, 0
    %v182 = vsel %vm141, %v42, 0
    %v185 = vsel %vm141, %v43, 0
    %v188 = vsel %vm141, %v44, 0
    %vm190 = vcmask 1041408
    %v192 = vsel %vm190, %v28, 0
    %194 = vmatprep.subr.mxu0 0.0
    %195 = vmatpush1.msra.mxu0 0.0
    %196 = vmatprep.subr.mxu0 0.0
    %197 = vmatpush1.msra.mxu0 0.0
    %198 = vmatprep.subr.mxu0 0.0
    %199 = vmatpush1.msra.mxu0 0.0
    %200 = vmatprep.subr.mxu0 0.0
    %201 = vmatpush1.msra.mxu0 0.0
    %202 = vmatprep.subr.mxu0 0.0
    %203 = vmatpush1.msra.mxu0 0.0
    %204 = vmatprep.subr.mxu0 0.0
    %205 = vmatpush1.msra.mxu0 0.0
    %206 = vmatprep.subr.mxu0 0.0
    %207 = vmatpush1.msra.mxu0 0.0
    %208 = vmatprep.subr.mxu0 0.0
    %209 = vmatpush1.msra.mxu0 0.0
    %210 = vmatprep.subr.mxu0 0.0
    %211 = vmatpush1.msra.mxu0 0.0
    %212 = vmatprep.subr.mxu0 0.0
    %213 = vmatpush1.msra.mxu0 0.0
    %214 = vmatprep.subr.mxu0 0.0
    %215 = vmatpush1.msra.mxu0 0.0
    %216 = vmatprep.subr.mxu0 0.0
    %217 = vmatpush1.msra.mxu0 0.0
    %218 = vmatprep.subr.mxu0 0.0
    %219 = vmatpush1.msra.mxu0 0.0
    %220 = vmatprep.subr.mxu0 0.0
    %221 = vmatpush1.msra.mxu0 0.0
    %222 = vmatprep.subr.mxu0 0.0
    %223 = vmatpush1.msra.mxu0 %v192
    %224 = vmatprep.subr.mxu0 0.0
    %225 = vmatpush1.msra.mxu0 %v27
    %226 = vmatprep.subr.mxu0 0.0
    %227 = vmatpush2.msra.mxu0 0.0
    %228 = vmatprep.subr.mxu0 0.0
    %229 = vmatpush2.msra.mxu0 0.0
    %230 = vmatprep.subr.mxu0 0.0
    %231 = vmatpush2.msra.mxu0 0.0
    %232 = vmatprep.subr.mxu0 0.0
    %233 = vmatpush2.msra.mxu0 0.0
    %234 = vmatprep.subr.mxu0 0.0
    %235 = vmatpush2.msra.mxu0 0.0
    %236 = vmatprep.subr.mxu0 0.0
    %237 = vmatpush2.msra.mxu0 0.0
    %238 = vmatprep.subr.mxu0 0.0
    %239 = vmatpush2.msra.mxu0 0.0
    %240 = vmatprep.subr.mxu0 0.0
    %241 = vmatpush2.msra.mxu0 0.0
    %242 = vmatprep.subr.mxu0 0.0
    %243 = vmatpush2.msra.mxu0 0.0
    %244 = vmatprep.subr.mxu0 0.0
    %245 = vmatpush2.msra.mxu0 0.0
    %246 = vmatprep.subr.mxu0 0.0
    %247 = vmatpush2.msra.mxu0 0.0
    %248 = vmatprep.subr.mxu0 0.0
    %249 = vmatpush2.msra.mxu0 0.0
    %250 = vmatprep.subr.mxu0 0.0
    %251 = vmatpush2.msra.mxu0 0.0
    %252 = vmatprep.subr.mxu0 0.0
    %253 = vmatpush2.msra.mxu0 0.0
    %254 = vmatprep.subr.mxu0 0.0
    %255 = vmatpush2.msra.mxu0 0.0
    %256 = vmatprep.subr.mxu0 0.0
    %257 = vmatpush2.msra.mxu0 0.0
    %258 = vmatprep.mubr.f32.mxu0 0.0
    %259 = vmatmul.mubr.f32.gmra.mxu0 %v143
    %v260 = vpop.f32.mrf.mxu0
    %v261 = vadd.f32 %v64, %v260
    %v262 = vpop.f32.mrf.mxu0
    %263 = vmatprep.mubr.f32.mxu0 0.0
    %264 = vmatmul.mubr.f32.gmra.mxu0 %v146
    %v265 = vpop.f32.mrf.mxu0
    %v266 = vadd.f32 %v69, %v265
    %v267 = vpop.f32.mrf.mxu0
    %268 = vmatprep.mubr.f32.mxu0 0.0
    %269 = vmatmul.mubr.f32.gmra.mxu0 %v149
    %v270 = vpop.f32.mrf.mxu0
    %v271 = vadd.f32 %v74, %v270
    %v272 = vpop.f32.mrf.mxu0
    %273 = vmatprep.mubr.f32.mxu0 0.0
    %274 = vmatmul.mubr.f32.gmra.mxu0 %v152
    %v275 = vpop.f32.mrf.mxu0
    %v276 = vadd.f32 %v79, %v275
    %v277 = vpop.f32.mrf.mxu0
    %278 = vmatprep.mubr.f32.mxu0 0.0
    %279 = vmatmul.mubr.f32.gmra.mxu0 %v155
    %v280 = vpop.f32.mrf.mxu0
    %v281 = vadd.f32 %v84, %v280
    %v282 = vpop.f32.mrf.mxu0
    %283 = vmatprep.mubr.f32.mxu0 0.0
    %284 = vmatmul.mubr.f32.gmra.mxu0 %v158
    %v285 = vpop.f32.mrf.mxu0
    %v286 = vadd.f32 %v89, %v285
    %v287 = vpop.f32.mrf.mxu0
    %288 = vmatprep.mubr.f32.mxu0 0.0
    %289 = vmatmul.mubr.f32.gmra.mxu0 %v161
    %v290 = vpop.f32.mrf.mxu0
    %v291 = vadd.f32 %v94, %v290
    %v292 = vpop.f32.mrf.mxu0
    %293 = vmatprep.mubr.f32.mxu0 0.0
    %294 = vmatmul.mubr.f32.gmra.mxu0 %v164
    %v295 = vpop.f32.mrf.mxu0
    %v296 = vadd.f32 %v99, %v295
    %v297 = vpop.f32.mrf.mxu0
    %298 = vmatprep.mubr.f32.mxu0 0.0
    %299 = vmatmul.mubr.f32.gmra.mxu0 %v167
    %v300 = vpop.f32.mrf.mxu0
    %v301 = vadd.f32 %v104, %v300
    %v302 = vpop.f32.mrf.mxu0
    %303 = vmatprep.mubr.f32.mxu0 0.0
    %304 = vmatmul.mubr.f32.gmra.mxu0 %v170
    %v305 = vpop.f32.mrf.mxu0
    %v306 = vadd.f32 %v109, %v305
    %v307 = vpop.f32.mrf.mxu0
    %308 = vmatprep.mubr.f32.mxu0 0.0
    %309 = vmatmul.mubr.f32.gmra.mxu0 %v173
    %v310 = vpop.f32.mrf.mxu0
    %v311 = vadd.f32 %v114, %v310
    %v312 = vpop.f32.mrf.mxu0
    %313 = vmatprep.mubr.f32.mxu0 0.0
    %314 = vmatmul.mubr.f32.gmra.mxu0 %v176
    %v315 = vpop.f32.mrf.mxu0
    %v316 = vadd.f32 %v119, %v315
    %v317 = vpop.f32.mrf.mxu0
    %318 = vmatprep.mubr.f32.mxu0 0.0
    %319 = vmatmul.mubr.f32.gmra.mxu0 %v179
    %v320 = vpop.f32.mrf.mxu0
    %v321 = vadd.f32 %v124, %v320
    %v322 = vpop.f32.mrf.mxu0
    %323 = vmatprep.mubr.f32.mxu0 0.0
    %324 = vmatmul.mubr.f32.gmra.mxu0 %v182
    %v325 = vpop.f32.mrf.mxu0
    %v326 = vadd.f32 %v129, %v325
    %v327 = vpop.f32.mrf.mxu0
    %328 = vmatprep.mubr.f32.mxu0 0.0
    %329 = vmatmul.mubr.f32.gmra.mxu0 %v185
    %v330 = vpop.f32.mrf.mxu0
    %v331 = vadd.f32 %v134, %v330
    %v332 = vpop.f32.mrf.mxu0
    %333 = vmatprep.mubr.f32.mxu0 0.0
    %334 = vmatmul.mubr.f32.gmra.mxu0 %v188
    %v335 = vpop.f32.mrf.mxu0
    %v336 = vadd.f32 %v139, %v335
    %v337 = vpop.f32.mrf.mxu0
    %338 = vdwg.mxu0
    %v339 = vmax.f32 %v261, 0.0
    %v340 = vmax.f32 %v266, 0.0
    %v341 = vmax.f32 %v271, 0.0
    %v342 = vmax.f32 %v276, 0.0
    %v343 = vmax.f32 %v281, 0.0
    %v344 = vmax.f32 %v286, 0.0
    %v345 = vmax.f32 %v291, 0.0
    %v346 = vmax.f32 %v296, 0.0
    %v347 = vmax.f32 %v301, 0.0
    %v348 = vmax.f32 %v306, 0.0
    %v349 = vmax.f32 %v311, 0.0
    %v350 = vmax.f32 %v316, 0.0
    %v351 = vmax.f32 %v321, 0.0
    %v352 = vmax.f32 %v326, 0.0
    %v353 = vmax.f32 %v331, 0.0
    %v354 = vmax.f32 %v336, 0.0
    %v355 = vld [vmem:[%s3] sm:$0xff]
    %v356 = vld [vmem:[%s3 + $0x8] sm:$0xff]
    %v357 = vld [vmem:[%s3 + $0x10] sm:$0xff]
    %v358 = vld [vmem:[%s3 + $0x18] sm:$0xff]
    %v359 = vld [vmem:[%s3 + $0x20] sm:$0xff]
    %v360 = vld [vmem:[%s3 + $0x28] sm:$0xff]
    %v361 = vld [vmem:[%s3 + $0x30] sm:$0xff]
    %v362 = vld [vmem:[%s3 + $0x38] sm:$0xff]
    %v363 = vld [vmem:[%s4] sm:$0xff]
    %v364 = vld [vmem:[%s4 + $0x8] sm:$0xff]
    %v365 = vld [vmem:[%s4 + $0x10] sm:$0xff]
    %v366 = vld [vmem:[%s4 + $0x18] sm:$0xff]
    %v367 = vld [vmem:[%s4 + $0x20] sm:$0xff]
    %v368 = vld [vmem:[%s4 + $0x28] sm:$0xff]
    %v369 = vld [vmem:[%s4 + $0x30] sm:$0xff]
    %v370 = vld [vmem:[%s4 + $0x38] sm:$0xff]
    %372 = vset.pattern.permute.xlu0 0
    %373 = vperm.xlu0 %372, %v363
    %v374 = vpop.permute.xlu0 %373
    %377 = vset.pattern.permute.xlu0 0
    %378 = vperm.xlu0 %377, %v364
    %v379 = vpop.permute.xlu0 %378
    %382 = vset.pattern.permute.xlu0 0
    %383 = vperm.xlu0 %382, %v365
    %v384 = vpop.permute.xlu0 %383
    %387 = vset.pattern.permute.xlu0 0
    %388 = vperm.xlu0 %387, %v366
    %v389 = vpop.permute.xlu0 %388
    %392 = vset.pattern.permute.xlu0 0
    %393 = vperm.xlu0 %392, %v367
    %v394 = vpop.permute.xlu0 %393
    %397 = vset.pattern.permute.xlu0 0
    %398 = vperm.xlu0 %397, %v368
    %v399 = vpop.permute.xlu0 %398
    %402 = vset.pattern.permute.xlu0 0
    %403 = vperm.xlu0 %402, %v369
    %v404 = vpop.permute.xlu0 %403
    %407 = vset.pattern.permute.xlu0 0
    %408 = vperm.xlu0 %407, %v370
    %v409 = vpop.permute.xlu0 %408
    %411 = vmatprep.subr.mxu0 0.0
    %412 = vmatpush1.msra.mxu0 %v354
    %413 = vmatprep.subr.mxu0 0.0
    %414 = vmatpush1.msra.mxu0 %v353
    %415 = vmatprep.subr.mxu0 0.0
    %416 = vmatpush1.msra.mxu0 %v352
    %417 = vmatprep.subr.mxu0 0.0
    %418 = vmatpush1.msra.mxu0 %v351
    %419 = vmatprep.subr.mxu0 0.0
    %420 = vmatpush1.msra.mxu0 %v350
    %421 = vmatprep.subr.mxu0 0.0
    %422 = vmatpush1.msra.mxu0 %v349
    %423 = vmatprep.subr.mxu0 0.0
    %424 = vmatpush1.msra.mxu0 %v348
    %425 = vmatprep.subr.mxu0 0.0
    %426 = vmatpush1.msra.mxu0 %v347
    %427 = vmatprep.subr.mxu0 0.0
    %428 = vmatpush1.msra.mxu0 %v346
    %429 = vmatprep.subr.mxu0 0.0
    %430 = vmatpush1.msra.mxu0 %v345
    %431 = vmatprep.subr.mxu0 0.0
    %432 = vmatpush1.msra.mxu0 %v344
    %433 = vmatprep.subr.mxu0 0.0
    %434 = vmatpush1.msra.mxu0 %v343
    %435 = vmatprep.subr.mxu0 0.0
    %436 = vmatpush1.msra.mxu0 %v342
    %437 = vmatprep.subr.mxu0 0.0
    %438 = vmatpush1.msra.mxu0 %v341
    %439 = vmatprep.subr.mxu0 0.0
    %440 = vmatpush1.msra.mxu0 %v340
    %441 = vmatprep.subr.mxu0 0.0
    %442 = vmatpush1.msra.mxu0 %v339
    %443 = vmatprep.subr.mxu0 0.0
    %444 = vmatpush2.msra.mxu0 0.0
    %445 = vmatprep.subr.mxu0 0.0
    %446 = vmatpush2.msra.mxu0 0.0
    %447 = vmatprep.subr.mxu0 0.0
    %448 = vmatpush2.msra.mxu0 0.0
    %449 = vmatprep.subr.mxu0 0.0
    %450 = vmatpush2.msra.mxu0 0.0
    %451 = vmatprep.subr.mxu0 0.0
    %452 = vmatpush2.msra.mxu0 0.0
    %453 = vmatprep.subr.mxu0 0.0
    %454 = vmatpush2.msra.mxu0 0.0
    %455 = vmatprep.subr.mxu0 0.0
    %456 = vmatpush2.msra.mxu0 0.0
    %457 = vmatprep.subr.mxu0 0.0
    %458 = vmatpush2.msra.mxu0 0.0
    %459 = vmatprep.subr.mxu0 0.0
    %460 = vmatpush2.msra.mxu0 0.0
    %461 = vmatprep.subr.mxu0 0.0
    %462 = vmatpush2.msra.mxu0 0.0
    %463 = vmatprep.subr.mxu0 0.0
    %464 = vmatpush2.msra.mxu0 0.0
    %465 = vmatprep.subr.mxu0 0.0
    %466 = vmatpush2.msra.mxu0 0.0
    %467 = vmatprep.subr.mxu0 0.0
    %468 = vmatpush2.msra.mxu0 0.0
    %469 = vmatprep.subr.mxu0 0.0
    %470 = vmatpush2.msra.mxu0 0.0
    %471 = vmatprep.subr.mxu0 0.0
    %472 = vmatpush2.msra.mxu0 0.0
    %473 = vmatprep.subr.mxu0 0.0
    %474 = vmatpush2.msra.mxu0 0.0
    %475 = vmatprep.mubr.f32.mxu0 0.0
    %476 = vmatmul.mubr.f32.gmra.mxu0 %v355
    %v477 = vpop.f32.mrf.mxu0
    %v478 = vadd.f32 %v374, %v477
    %v479 = vpop.f32.mrf.mxu0
    %480 = vmatprep.mubr.f32.mxu0 0.0
    %481 = vmatmul.mubr.f32.gmra.mxu0 %v356
    %v482 = vpop.f32.mrf.mxu0
    %v483 = vadd.f32 %v379, %v482
    %v484 = vpop.f32.mrf.mxu0
    %485 = vmatprep.mubr.f32.mxu0 0.0
    %486 = vmatmul.mubr.f32.gmra.mxu0 %v357
    %v487 = vpop.f32.mrf.mxu0
    %v488 = vadd.f32 %v384, %v487
    %v489 = vpop.f32.mrf.mxu0
    %490 = vmatprep.mubr.f32.mxu0 0.0
    %491 = vmatmul.mubr.f32.gmra.mxu0 %v358
    %v492 = vpop.f32.mrf.mxu0
    %v493 = vadd.f32 %v389, %v492
    %v494 = vpop.f32.mrf.mxu0
    %495 = vmatprep.mubr.f32.mxu0 0.0
    %496 = vmatmul.mubr.f32.gmra.mxu0 %v359
    %v497 = vpop.f32.mrf.mxu0
    %v498 = vadd.f32 %v394, %v497
    %v499 = vpop.f32.mrf.mxu0
    %500 = vmatprep.mubr.f32.mxu0 0.0
    %501 = vmatmul.mubr.f32.gmra.mxu0 %v360
    %v502 = vpop.f32.mrf.mxu0
    %v503 = vadd.f32 %v399, %v502
    %v504 = vpop.f32.mrf.mxu0
    %505 = vmatprep.mubr.f32.mxu0 0.0
    %506 = vmatmul.mubr.f32.gmra.mxu0 %v361
    %v507 = vpop.f32.mrf.mxu0
    %v508 = vadd.f32 %v404, %v507
    %v509 = vpop.f32.mrf.mxu0
    %510 = vmatprep.mubr.f32.mxu0 0.0
    %511 = vmatmul.mubr.f32.gmra.mxu0 %v362
    %v512 = vpop.f32.mrf.mxu0
    %v513 = vadd.f32 %v409, %v512
    %v514 = vpop.f32.mrf.mxu0
    %515 = vdwg.mxu0
    %v516 = vmax.f32 %v478, 0.0
    %v517 = vmax.f32 %v483, 0.0
    %v518 = vmax.f32 %v488, 0.0
    %v519 = vmax.f32 %v493, 0.0
    %v520 = vmax.f32 %v498, 0.0
    %v521 = vmax.f32 %v503, 0.0
    %v522 = vmax.f32 %v508, 0.0
    %v523 = vmax.f32 %v513, 0.0
    %v524 = vld [vmem:[%s5] sm:$0x7]
    %v525 = vld [vmem:[%s6] sm:$0x7]
    %527 = vset.pattern.permute.xlu0 0
    %528 = vperm.xlu0 %527, %v525
    %v529 = vpop.permute.xlu0 %528
    %vm531 = vcmask 523264
    %v533 = vsel %vm531, %v524, 0
    %535 = vmatprep.subr.mxu0 0.0
    %536 = vmatpush1.msra.mxu0 0.0
    %537 = vmatprep.subr.mxu0 0.0
    %538 = vmatpush1.msra.mxu0 0.0
    %539 = vmatprep.subr.mxu0 0.0
    %540 = vmatpush1.msra.mxu0 0.0
    %541 = vmatprep.subr.mxu0 0.0
    %542 = vmatpush1.msra.mxu0 0.0
    %543 = vmatprep.subr.mxu0 0.0
    %544 = vmatpush1.msra.mxu0 0.0
    %545 = vmatprep.subr.mxu0 0.0
    %546 = vmatpush1.msra.mxu0 0.0
    %547 = vmatprep.subr.mxu0 0.0
    %548 = vmatpush1.msra.mxu0 0.0
    %549 = vmatprep.subr.mxu0 0.0
    %550 = vmatpush1.msra.mxu0 0.0
    %551 = vmatprep.subr.mxu0 0.0
    %552 = vmatpush1.msra.mxu0 %v523
    %553 = vmatprep.subr.mxu0 0.0
    %554 = vmatpush1.msra.mxu0 %v522
    %555 = vmatprep.subr.mxu0 0.0
    %556 = vmatpush1.msra.mxu0 %v521
    %557 = vmatprep.subr.mxu0 0.0
    %558 = vmatpush1.msra.mxu0 %v520
    %559 = vmatprep.subr.mxu0 0.0
    %560 = vmatpush1.msra.mxu0 %v519
    %561 = vmatprep.subr.mxu0 0.0
    %562 = vmatpush1.msra.mxu0 %v518
    %563 = vmatprep.subr.mxu0 0.0
    %564 = vmatpush1.msra.mxu0 %v517
    %565 = vmatprep.subr.mxu0 0.0
    %566 = vmatpush1.msra.mxu0 %v516
    %567 = vmatprep.subr.mxu0 0.0
    %568 = vmatpush2.msra.mxu0 0.0
    %569 = vmatprep.subr.mxu0 0.0
    %570 = vmatpush2.msra.mxu0 0.0
    %571 = vmatprep.subr.mxu0 0.0
    %572 = vmatpush2.msra.mxu0 0.0
    %573 = vmatprep.subr.mxu0 0.0
    %574 = vmatpush2.msra.mxu0 0.0
    %575 = vmatprep.subr.mxu0 0.0
    %576 = vmatpush2.msra.mxu0 0.0
    %577 = vmatprep.subr.mxu0 0.0
    %578 = vmatpush2.msra.mxu0 0.0
    %579 = vmatprep.subr.mxu0 0.0
    %580 = vmatpush2.msra.mxu0 0.0
    %581 = vmatprep.subr.mxu0 0.0
    %582 = vmatpush2.msra.mxu0 0.0
    %583 = vmatprep.subr.mxu0 0.0
    %584 = vmatpush2.msra.mxu0 0.0
    %585 = vmatprep.subr.mxu0 0.0
    %586 = vmatpush2.msra.mxu0 0.0
    %587 = vmatprep.subr.mxu0 0.0
    %588 = vmatpush2.msra.mxu0 0.0
    %589 = vmatprep.subr.mxu0 0.0
    %590 = vmatpush2.msra.mxu0 0.0
    %591 = vmatprep.subr.mxu0 0.0
    %592 = vmatpush2.msra.mxu0 0.0
    %593 = vmatprep.subr.mxu0 0.0
    %594 = vmatpush2.msra.mxu0 0.0
    %595 = vmatprep.subr.mxu0 0.0
    %596 = vmatpush2.msra.mxu0 0.0
    %597 = vmatprep.subr.mxu0 0.0
    %598 = vmatpush2.msra.mxu0 0.0
    %599 = vmatprep.mubr.f32.mxu0 0.0
    %600 = vmatmul.mubr.f32.gmra.mxu0 %v533
    %v601 = vpop.f32.mrf.mxu0
    %v602 = vadd.f32 %v529, %v601
    %v603 = vpop.f32.mrf.mxu0
    %604 = vdwg.mxu0
    %605 = vst [vmem:[#allocation2] sm:$0x7] %v602
    // Predicated region
    $region30: #{tpu_custom_call.1} parent=1 // pred_check
      _
    $region31: #{tpu_custom_call.1} parent=1 // pred_check_branch
      %607 = sbr.rel (0) target = $region33
    $region32: #{tpu_custom_call.1} parent=1 // pred_region
      %s609 = ssub.s32 64, 64
      %610 = vsyncadd [#allocation3], %s609
      %s612 = sshll.u32 [#allocation2], 4
      %s613 = int_to_ptr.vmem [resolvable:$true] %s612
      %615 = dma.vmem_to_hbm [thread:$0]  %s613, 64, %s7, [#allocation3]
    $region33: #{tpu_custom_call.1} parent=1 // pred_fallthru
      _
    // Predicated region
    $region34: #{tpu_custom_call.1} parent=1 // pred_check
      _
    $region35: #{tpu_custom_call.1} parent=1 // pred_check_branch
      %617 = sbr.rel (0) target = $region37
    $region36: #{tpu_custom_call.1} parent=1 // pred_region
      %618 = dma.done [#allocation3], 64
    $region37: #{tpu_custom_call.1} parent=1 // pred_fallthru
      _
    %619 = vsyncpa [#allocation3], 1

</llo_original>
